<compile_context>
chip_gen: v5e
topology: v5e:2x2
jax: 0.10.0
libtpu: 0.0.40
codegen_flags: <defaults>
</compile_context>

<pallas_src>
import math
import functools

import jax
import jax.numpy as jnp
from jax.experimental import pallas as pl
from jax.experimental.pallas import tpu as pltpu

# ------------------------------------------------------------------ config
B = 2                 # batch
SEQ = 8               # sequence length (multiple of 8 sublanes)
D = 32                # token / model dim
N_HEADS = 2
HEAD_DIM = D // N_HEADS
TOK = B * SEQ         # batch folded into the token (sublane) axis
D_PAD = 128           # lane-dense output width (sliced back to D in wrapper)
NEG_INF = -1e30


# ------------------------------------------------------------------ kernel
def mhsa_kernel(n_heads, head_dim, d,
                x_ref, wqkv_ref, wo_ref, bo_ref, bias_ref, out_ref):
    """Fused MHSA forward (all batches stacked on the sublane axis).

    x_ref    : (TOK, D+1)            tokens + ones column (bias trick)
    wqkv_ref : (D+1, 3*D)            [Wq | Wk | Wv], last row = biases
    wo_ref   : (H, HEAD_DIM, D_PAD)  per-head slabs of W_o (output-padded)
    bo_ref   : (1, D_PAD)            output bias (zero-padded)
    bias_ref : (TOK, TOK)            0 on per-batch block diagonal, -1e30 off
    out_ref  : (TOK, D_PAD)
    """
    f32 = jnp.float32
    scale = 1.0 / math.sqrt(head_dim)

    x = x_ref[...]                                                   # (TOK, D+1)
    # Single fused MXU push for Q, K and V (biases included via ones column).
    qkv = jnp.dot(x, wqkv_ref[...], preferred_element_type=f32)      # (TOK, 3D)

    attn_bias = bias_ref[...]                                        # (TOK, TOK)

    out = bo_ref[...]                                                # (1, D_PAD)
    for h in range(n_heads):                                         # unrolled
        lo = h * head_dim
        qh = qkv[:, lo:lo + head_dim]                                # (TOK, Hd)
        kh = qkv[:, d + lo:d + lo + head_dim]
        vh = qkv[:, 2 * d + lo:2 * d + lo + head_dim]

        # scores over ALL stacked tokens; cross-batch pairs pushed to -inf.
        s = jax.lax.dot_general(qh, kh, (((1,), (1,)), ((), ())),
                                preferred_element_type=f32)          # (TOK, TOK)
        s = s * scale + attn_bias
        s = s - jnp.max(s, axis=-1, keepdims=True)
        p = jnp.exp(s)
        p = p * pl.reciprocal(jnp.sum(p, axis=-1, keepdims=True), approx=True)

        oh = jnp.dot(p, vh, preferred_element_type=f32)              # (TOK, Hd)
        # Head concat folded into the output projection via per-head W_o slab.
        out = out + jnp.dot(oh, wo_ref[h], preferred_element_type=f32)

    out_ref[...] = out                                               # (TOK, D_PAD)


# ----------------------------------------------------------------- wrapper
def mhsa_forward(x, params):
    b, s, d = x.shape
    tok = b * s

    # ---- wrapper-side layout glue (cheap XLA ops, outside the kernel) ----
    x2d = x.reshape(tok, d)
    x_aug = jnp.concatenate([x2d, jnp.ones((tok, 1), x.dtype)], axis=-1)     # (TOK, D+1)

    w_qkv = jnp.concatenate([params["wq"], params["wk"], params["wv"]], 1)   # (D, 3D)
    b_qkv = jnp.concatenate([params["bq"], params["bk"], params["bv"]], 0)   # (3D,)
    qkv_slab = jnp.concatenate([w_qkv, b_qkv[None, :]], axis=0)              # (D+1, 3D)

    wo_pad = jnp.zeros((d, D_PAD), jnp.float32).at[:, :d].set(params["wo"])
    wo_heads = wo_pad.reshape(N_HEADS, HEAD_DIM, D_PAD)                      # (H, Hd, 128)
    bo_pad = jnp.zeros((1, D_PAD), jnp.float32).at[0, :d].set(params["bo"])

    # block-diagonal additive attention bias: tokens only attend within their
    # own batch element (the batch is folded into the token axis).
    batch_id = jnp.arange(tok, dtype=jnp.int32) // s
    attn_bias = jnp.where(batch_id[:, None] == batch_id[None, :],
                          0.0, NEG_INF).astype(jnp.float32)                  # (TOK, TOK)

    flops = (2 * tok * (d + 1) * 3 * d
             + N_HEADS * (2 * tok * tok * HEAD_DIM * 2 + 2 * tok * HEAD_DIM * D_PAD))
    bytes_accessed = 4 * (x_aug.size + qkv_slab.size + wo_heads.size
                          + bo_pad.size + attn_bias.size + tok * D_PAD)

    out_pad = pl.pallas_call(
        functools.partial(mhsa_kernel, N_HEADS, HEAD_DIM, d),
        grid=(1,),
        in_specs=[
            pl.BlockSpec((tok, d + 1), lambda i: (0, 0)),
            pl.BlockSpec((d + 1, 3 * d), lambda i: (0, 0)),
            pl.BlockSpec((N_HEADS, HEAD_DIM, D_PAD), lambda i: (0, 0, 0)),
            pl.BlockSpec((1, D_PAD), lambda i: (0, 0)),
            pl.BlockSpec((tok, tok), lambda i: (0, 0)),
        ],
        out_specs=pl.BlockSpec((tok, D_PAD), lambda i: (0, 0)),
        out_shape=jax.ShapeDtypeStruct((tok, D_PAD), jnp.float32),
        compiler_params=pltpu.CompilerParams(dimension_semantics=("arbitrary",)),
        cost_estimate=pl.CostEstimate(flops=flops,
                                      transcendentals=N_HEADS * tok * tok,
                                      bytes_accessed=bytes_accessed),
    )(x_aug, qkv_slab, wo_heads, bo_pad, attn_bias)

    return out_pad[:, :d].reshape(b, s, d)


# ---------------------------------------------------------------- reference
def mhsa_reference(x, p):
    """Plain-JAX transcription of the PyTorch MHSA.forward."""
    b, s, d = x.shape

    def split(z):
        return z.reshape(b, s, N_HEADS, HEAD_DIM).transpose(0, 2, 1, 3)

    q = split(x @ p["wq"] + p["bq"])
    k = split(x @ p["wk"] + p["bk"])
    v = split(x @ p["wv"] + p["bv"])
    scores = jnp.einsum("bhqd,bhkd->bhqk", q, k) / math.sqrt(HEAD_DIM)
    w = jax.nn.softmax(scores, axis=-1)
    o = jnp.einsum("bhqk,bhkd->bhqd", w, v)
    o = o.transpose(0, 2, 1, 3).reshape(b, s, d)
    return o @ p["wo"] + p["bo"]


def init_params(key):
    ks = jax.random.split(key, 8)
    lim = 1.0 / math.sqrt(D)
    u = lambda k, shape: jax.random.uniform(k, shape, jnp.float32, -lim, lim)
    # weights stored in (in, out) orientation (== PyTorch W.T), same math.
    return {
        "wq": u(ks[0], (D, D)), "bq": u(ks[1], (D,)),
        "wk": u(ks[2], (D, D)), "bk": u(ks[3], (D,)),
        "wv": u(ks[4], (D, D)), "bv": u(ks[5], (D,)),
        "wo": u(ks[6], (D, D)), "bo": u(ks[7], (D,)),
    }


# --------------------------------------------------------------------- main
if __name__ == "__main__":
    key = jax.random.PRNGKey(0)
    k_param, k_x = jax.random.split(key)
    params = init_params(k_param)
    x = jax.random.normal(k_x, (B, SEQ, D), jnp.float32)

    out = jax.block_until_ready(jax.jit(mhsa_forward)(x, params))
    assert out.shape == (B, SEQ, D), out.shape
    assert bool(jnp.all(jnp.isfinite(out)))

    # Correctness vs. plain-JAX reference (tolerance covers MXU default matmul
    # precision and the EUP approximate reciprocal in the softmax).
    ref = mhsa_reference(x, params)
    assert bool(jnp.allclose(out, ref, rtol=2e-2, atol=1e-2)), \
        float(jnp.max(jnp.abs(out - ref)))

    print("KERNEL_OK")
</pallas_src>

<mosaic_0001>
module attributes {stable_mosaic.version = 11 : i64} {
  func.func @mhsa_kernel(%arg0: i32, %arg1: memref<16x33xf32, #tpu.memory_space<vmem>>, %arg2: memref<33x96xf32, #tpu.memory_space<vmem>>, %arg3: memref<2x16x128xf32, #tpu.memory_space<vmem>>, %arg4: memref<1x128xf32, #tpu.memory_space<vmem>>, %arg5: memref<16x16xf32, #tpu.memory_space<vmem>>, %arg6: memref<16x128xf32, #tpu.memory_space<vmem>>) attributes {dimension_semantics = [#tpu.dimension_semantics<arbitrary>], iteration_bounds = array<i64: 1>, scalar_prefetch = 0 : i64, scratch_operands = 0 : i64, tpu.core_type = #tpu.core_type<tc>, window_params = [{pipeline_mode = #tpu.pipeline_mode<synchronous>, transform_indices = @transform_0, window_bounds = array<i64: 16, 33>}, {pipeline_mode = #tpu.pipeline_mode<synchronous>, transform_indices = @transform_1, window_bounds = array<i64: 33, 96>}, {pipeline_mode = #tpu.pipeline_mode<synchronous>, transform_indices = @transform_2, window_bounds = array<i64: 2, 16, 128>}, {pipeline_mode = #tpu.pipeline_mode<synchronous>, transform_indices = @transform_3, window_bounds = array<i64: 1, 128>}, {pipeline_mode = #tpu.pipeline_mode<synchronous>, transform_indices = @transform_4, window_bounds = array<i64: 16, 16>}, {pipeline_mode = #tpu.pipeline_mode<synchronous>, transform_indices = @transform_5, window_bounds = array<i64: 16, 128>}]} {
    %c0 = arith.constant 0 : index
    %c0_0 = arith.constant 0 : index
    %0 = vector.load %arg1[%c0, %c0_0] : memref<16x33xf32, #tpu.memory_space<vmem>>, vector<16x33xf32>
    %c0_1 = arith.constant 0 : index
    %c0_2 = arith.constant 0 : index
    %1 = vector.load %arg2[%c0_1, %c0_2] : memref<33x96xf32, #tpu.memory_space<vmem>>, vector<33x96xf32>
    %cst = arith.constant dense<0.000000e+00> : vector<16x96xf32>
    %2 = tpu.matmul %0, %1, %cst {dimension_numbers = #tpu.dot_dimension_numbers<[1], [0], [0], [1], [0, 0, 1, 1], [], []>} : vector<16x33xf32>, vector<33x96xf32>, vector<16x96xf32> -> vector<16x96xf32>
    %c0_3 = arith.constant 0 : index
    %c0_4 = arith.constant 0 : index
    %3 = vector.load %arg5[%c0_3, %c0_4] : memref<16x16xf32, #tpu.memory_space<vmem>>, vector<16x16xf32>
    %c0_5 = arith.constant 0 : index
    %c0_6 = arith.constant 0 : index
    %4 = vector.load %arg4[%c0_5, %c0_6] : memref<1x128xf32, #tpu.memory_space<vmem>>, vector<1x128xf32>
    %5 = vector.extract_strided_slice %2 {offsets = [0, 0], sizes = [16, 16], strides = [1, 1]} : vector<16x96xf32> to vector<16x16xf32>
    %6 = vector.extract_strided_slice %2 {offsets = [0, 32], sizes = [16, 16], strides = [1, 1]} : vector<16x96xf32> to vector<16x16xf32>
    %7 = vector.extract_strided_slice %2 {offsets = [0, 64], sizes = [16, 16], strides = [1, 1]} : vector<16x96xf32> to vector<16x16xf32>
    %cst_7 = arith.constant dense<0.000000e+00> : vector<16x16xf32>
    %8 = tpu.matmul %5, %6, %cst_7 {dimension_numbers = #tpu.dot_dimension_numbers<[1], [1], [0], [0], [0, 0, 1, 0], [], []>} : vector<16x16xf32>, vector<16x16xf32>, vector<16x16xf32> -> vector<16x16xf32>
    %cst_8 = arith.constant 2.500000e-01 : f32
    %9 = vector.broadcast %cst_8 : f32 to vector<16x16xf32>
    %10 = arith.mulf %8, %9 : vector<16x16xf32>
    %11 = arith.addf %10, %3 : vector<16x16xf32>
    %cst_9 = arith.constant dense<0xFF800000> : vector<16xf32>
    %12 = vector.multi_reduction <maximumf>, %11, %cst_9 [1] : vector<16x16xf32> to vector<16xf32>
    %13 = vector.shape_cast %12 : vector<16xf32> to vector<16x1xf32>
    %14 = vector.broadcast %13 : vector<16x1xf32> to vector<16x16xf32>
    %15 = arith.subf %11, %14 : vector<16x16xf32>
    %16 = math.exp %15 : vector<16x16xf32>
    %cst_10 = arith.constant dense<0.000000e+00> : vector<16xf32>
    %17 = vector.multi_reduction <add>, %16, %cst_10 [1] : vector<16x16xf32> to vector<16xf32>
    %18 = vector.shape_cast %17 : vector<16xf32> to vector<16x1xf32>
    %19 = tpu.reciprocal %18 {approx = true} : vector<16x1xf32> -> vector<16x1xf32>
    %20 = vector.broadcast %19 : vector<16x1xf32> to vector<16x16xf32>
    %21 = arith.mulf %16, %20 : vector<16x16xf32>
    %cst_11 = arith.constant dense<0.000000e+00> : vector<16x16xf32>
    %22 = tpu.matmul %21, %7, %cst_11 {dimension_numbers = #tpu.dot_dimension_numbers<[1], [0], [0], [1], [0, 0, 1, 1], [], []>} : vector<16x16xf32>, vector<16x16xf32>, vector<16x16xf32> -> vector<16x16xf32>
    %c0_12 = arith.constant 0 : index
    %c0_13 = arith.constant 0 : index
    %c0_14 = arith.constant 0 : index
    %23 = vector.load %arg3[%c0_12, %c0_13, %c0_14] : memref<2x16x128xf32, #tpu.memory_space<vmem>>, vector<1x16x128xf32>
    %24 = vector.shape_cast %23 : vector<1x16x128xf32> to vector<16x128xf32>
    %cst_15 = arith.constant dense<0.000000e+00> : vector<16x128xf32>
    %25 = tpu.matmul %22, %24, %cst_15 {dimension_numbers = #tpu.dot_dimension_numbers<[1], [0], [0], [1], [0, 0, 1, 1], [], []>} : vector<16x16xf32>, vector<16x128xf32>, vector<16x128xf32> -> vector<16x128xf32>
    %26 = vector.broadcast %4 : vector<1x128xf32> to vector<16x128xf32>
    %27 = arith.addf %26, %25 : vector<16x128xf32>
    %28 = vector.extract_strided_slice %2 {offsets = [0, 16], sizes = [16, 16], strides = [1, 1]} : vector<16x96xf32> to vector<16x16xf32>
    %29 = vector.extract_strided_slice %2 {offsets = [0, 48], sizes = [16, 16], strides = [1, 1]} : vector<16x96xf32> to vector<16x16xf32>
    %30 = vector.extract_strided_slice %2 {offsets = [0, 80], sizes = [16, 16], strides = [1, 1]} : vector<16x96xf32> to vector<16x16xf32>
    %cst_16 = arith.constant dense<0.000000e+00> : vector<16x16xf32>
    %31 = tpu.matmul %28, %29, %cst_16 {dimension_numbers = #tpu.dot_dimension_numbers<[1], [1], [0], [0], [0, 0, 1, 0], [], []>} : vector<16x16xf32>, vector<16x16xf32>, vector<16x16xf32> -> vector<16x16xf32>
    %cst_17 = arith.constant 2.500000e-01 : f32
    %32 = vector.broadcast %cst_17 : f32 to vector<16x16xf32>
    %33 = arith.mulf %31, %32 : vector<16x16xf32>
    %34 = arith.addf %33, %3 : vector<16x16xf32>
    %cst_18 = arith.constant dense<0xFF800000> : vector<16xf32>
    %35 = vector.multi_reduction <maximumf>, %34, %cst_18 [1] : vector<16x16xf32> to vector<16xf32>
    %36 = vector.shape_cast %35 : vector<16xf32> to vector<16x1xf32>
    %37 = vector.broadcast %36 : vector<16x1xf32> to vector<16x16xf32>
    %38 = arith.subf %34, %37 : vector<16x16xf32>
    %39 = math.exp %38 : vector<16x16xf32>
    %cst_19 = arith.constant dense<0.000000e+00> : vector<16xf32>
    %40 = vector.multi_reduction <add>, %39, %cst_19 [1] : vector<16x16xf32> to vector<16xf32>
    %41 = vector.shape_cast %40 : vector<16xf32> to vector<16x1xf32>
    %42 = tpu.reciprocal %41 {approx = true} : vector<16x1xf32> -> vector<16x1xf32>
    %43 = vector.broadcast %42 : vector<16x1xf32> to vector<16x16xf32>
    %44 = arith.mulf %39, %43 : vector<16x16xf32>
    %cst_20 = arith.constant dense<0.000000e+00> : vector<16x16xf32>
    %45 = tpu.matmul %44, %30, %cst_20 {dimension_numbers = #tpu.dot_dimension_numbers<[1], [0], [0], [1], [0, 0, 1, 1], [], []>} : vector<16x16xf32>, vector<16x16xf32>, vector<16x16xf32> -> vector<16x16xf32>
    %c1 = arith.constant 1 : index
    %c0_21 = arith.constant 0 : index
    %c0_22 = arith.constant 0 : index
    %46 = vector.load %arg3[%c1, %c0_21, %c0_22] : memref<2x16x128xf32, #tpu.memory_space<vmem>>, vector<1x16x128xf32>
    %47 = vector.shape_cast %46 : vector<1x16x128xf32> to vector<16x128xf32>
    %cst_23 = arith.constant dense<0.000000e+00> : vector<16x128xf32>
    %48 = tpu.matmul %45, %47, %cst_23 {dimension_numbers = #tpu.dot_dimension_numbers<[1], [0], [0], [1], [0, 0, 1, 1], [], []>} : vector<16x16xf32>, vector<16x128xf32>, vector<16x128xf32> -> vector<16x128xf32>
    %49 = arith.addf %27, %48 : vector<16x128xf32>
    %c0_24 = arith.constant 0 : index
    %c0_25 = arith.constant 0 : index
    %50 = vector.load %arg6[%c0_24, %c0_25] : memref<16x128xf32, #tpu.memory_space<vmem>>, vector<16x128xf32>
    tpu.vector_store %arg6[%c0_24, %c0_25], %49 {strides = array<i32>} : memref<16x128xf32, #tpu.memory_space<vmem>>, vector<16x128xf32>,
    return
  }
  func.func @transform_0(%arg0: i32) -> (i32, i32) {
    %c0_i32 = arith.constant 0 : i32
    %c0_i32_0 = arith.constant 0 : i32
    %c0_i32_1 = arith.constant 0 : i32
    return %c0_i32, %c0_i32_0 : i32, i32
  }
  func.func @transform_1(%arg0: i32) -> (i32, i32) {
    %c0_i32 = arith.constant 0 : i32
    %c0_i32_0 = arith.constant 0 : i32
    %c0_i32_1 = arith.constant 0 : i32
    return %c0_i32, %c0_i32_0 : i32, i32
  }
  func.func @transform_2(%arg0: i32) -> (i32, i32, i32) {
    %c0_i32 = arith.constant 0 : i32
    %c0_i32_0 = arith.constant 0 : i32
    %c0_i32_1 = arith.constant 0 : i32
    %c0_i32_2 = arith.constant 0 : i32
    return %c0_i32, %c0_i32_0, %c0_i32_1 : i32, i32, i32
  }
  func.func @transform_3(%arg0: i32) -> (i32, i32) {
    %c0_i32 = arith.constant 0 : i32
    %c0_i32_0 = arith.constant 0 : i32
    %c0_i32_1 = arith.constant 0 : i32
    return %c0_i32, %c0_i32_0 : i32, i32
  }
  func.func @transform_4(%arg0: i32) -> (i32, i32) {
    %c0_i32 = arith.constant 0 : i32
    %c0_i32_0 = arith.constant 0 : i32
    %c0_i32_1 = arith.constant 0 : i32
    return %c0_i32, %c0_i32_0 : i32, i32
  }
  func.func @transform_5(%arg0: i32) -> (i32, i32) {
    %c0_i32 = arith.constant 0 : i32
    %c0_i32_0 = arith.constant 0 : i32
    %c0_i32_1 = arith.constant 0 : i32
    return %c0_i32, %c0_i32_0 : i32, i32
  }
}

</mosaic_0001>

<llo_original>
// kernel: mhsa_forward.1
$region0: #{mhsa_forward.1}
  #allocation0 [shape = 'u32[]', space=smem, size = 0x4, offset = 0x4, fixed_abs, tag = 'smem constant byte address 0x4 - core index']
  #allocation1 [shape = 'u32[72,128]{1,0:T(1,128)}', space=vmem, size = 0x9000, scoped, tag = 'internal scratch']
  %s0 = inlined_call_operand.vmem [shape: f32[16,33], index: 0, kind: input, shape index: {}]
  %s1 = inlined_call_operand.vmem [shape: f32[33,96], index: 1, kind: input, shape index: {}]
  %s2 = inlined_call_operand.vmem [shape: f32[2,16,128], index: 2, kind: input, shape index: {}]
  %s3 = inlined_call_operand.vmem [shape: f32[1,128], index: 3, kind: input, shape index: {}]
  %s4 = inlined_call_operand.vmem [shape: f32[16,16], index: 4, kind: input, shape index: {}]
  %s5 = inlined_call_operand.vmem [shape: f32[16,128], index: 5, kind: output, shape index: {}]
  %s6 = sld [smem:[#allocation0]]
  $region30: #{mhsa_forward.1} parent=0
    _
  %s8 = ssub.s32 1, %s6
  %s9 = scalar_select 0, %s8, %s6
  // Predicated region
  $region2: #{mhsa_forward.1} parent=0 // pred_check
    _
  $region3: #{mhsa_forward.1} parent=0 // pred_check_branch
    %11 = sbr.rel (0) target = $region5
  $region4: #{mhsa_forward.1} parent=0 // pred_region
    _
  $region5: #{mhsa_forward.1} parent=0 // pred_fallthru
    _
  // Predicated region
  $region6: #{mhsa_forward.1} parent=0 // pred_check
    _
  $region7: #{mhsa_forward.1} parent=0 // pred_check_branch
    %13 = sbr.rel (0) target = $region9
  $region8: #{mhsa_forward.1} parent=0 // pred_region
    _
  $region9: #{mhsa_forward.1} parent=0 // pred_fallthru
    _
  // Predicated region
  $region10: #{mhsa_forward.1} parent=0 // pred_check
    _
  $region11: #{mhsa_forward.1} parent=0 // pred_check_branch
    %15 = sbr.rel (0) target = $region13
  $region12: #{mhsa_forward.1} parent=0 // pred_region
    _
  $region13: #{mhsa_forward.1} parent=0 // pred_fallthru
    _
  // Predicated region
  $region14: #{mhsa_forward.1} parent=0 // pred_check
    _
  $region15: #{mhsa_forward.1} parent=0 // pred_check_branch
    %17 = sbr.rel (0) target = $region17
  $region16: #{mhsa_forward.1} parent=0 // pred_region
    _
  $region17: #{mhsa_forward.1} parent=0 // pred_fallthru
    _
  // Predicated region
  $region18: #{mhsa_forward.1} parent=0 // pred_check
    _
  $region19: #{mhsa_forward.1} parent=0 // pred_check_branch
    %19 = sbr.rel (0) target = $region21
  $region20: #{mhsa_forward.1} parent=0 // pred_region
    _
  $region21: #{mhsa_forward.1} parent=0 // pred_fallthru
    _
  %v20 = vld [vmem:[%s0] sm:$0xff]
  %v21 = vld [vmem:[%s0 + $0x8] sm:$0xff]
  %v22 = vld [vmem:[%s1] sm:$0xff]
  %v23 = vld [vmem:[%s1 + $0x8] sm:$0xff]
  %v24 = vld [vmem:[%s1 + $0x10] sm:$0xff]
  %v25 = vld [vmem:[%s1 + $0x18] sm:$0xff]
  %v26 = vld [vmem:[%s1 + $0x20] sm:$0x1]
  %vm27 = vcmask 269312
  %v29 = vsel %vm27, %v20, 0
  %v32 = vsel %vm27, %v21, 0
  %vm34 = vcmask 1040384
  %v36 = vsel %vm34, %v26, 0
  %38 = vmatpush.msra.mxu0 0.0
  %39 = vmatpush.msra.mxu0 0.0
  %40 = vmatpush.msra.mxu0 0.0
  %41 = vmatpush.msra.mxu0 0.0
  %42 = vmatpush.msra.mxu0 0.0
  %43 = vmatpush.msra.mxu0 0.0
  %44 = vmatpush.msra.mxu0 0.0
  %45 = vmatpush.msra.mxu0 0.0
  %46 = vmatpush.msra.mxu0 0.0
  %47 = vmatpush.msra.mxu0 0.0
  %48 = vmatpush.msra.mxu0 0.0
  %49 = vmatpush.msra.mxu0 %v36
  %50 = vmatpush.msra.mxu0 %v25
  %51 = vmatpush.msra.mxu0 %v24
  %52 = vmatpush.msra.mxu0 %v23
  %53 = vmatpush.msra.mxu0 %v22
  %54 = vmatmul.f32.gmra.mxu0 %v29
  %v55 = vpop.f32.mrf.mxu0
  %v56 = vadd.f32 0.0, %v55
  %57 = vmatmul.f32.gmra.mxu0 %v32
  %v58 = vpop.f32.mrf.mxu0
  %v59 = vadd.f32 0.0, %v58
  %60 = vdwg.mxu0
  %v61 = vld [vmem:[%s4] sm:$0xff]
  %v62 = vld [vmem:[%s4 + $0x8] sm:$0xff]
  %v63 = vld [vmem:[%s3] sm:$0x1]
  %66 = vrot.lane.b32.xlu0 %v56, 96
  %v67 = vpop.permute.xlu0 %66
  %68 = vrot.lane.b32.xlu0 %v59, 96
  %v69 = vpop.permute.xlu0 %68
  %vm70 = vcmask 130048
  %v71 = vsel %vm70, %v56, 0
  %v73 = vsel %vm70, %v59, 0
  %v75 = vsel %vm70, %v67, 0
  %v77 = vsel %vm70, %v69, 0
  %79 = vmatpush.xpose.msra.mxu0 0.0
  %80 = vmatpush.xpose.msra.mxu0 0.0
  %81 = vmatpush.xpose.msra.mxu0 0.0
  %82 = vmatpush.xpose.msra.mxu0 0.0
  %83 = vmatpush.xpose.msra.mxu0 0.0
  %84 = vmatpush.xpose.msra.mxu0 0.0
  %85 = vmatpush.xpose.msra.mxu0 0.0
  %86 = vmatpush.xpose.msra.mxu0 0.0
  %87 = vmatpush.xpose.msra.mxu0 0.0
  %88 = vmatpush.xpose.msra.mxu0 0.0
  %89 = vmatpush.xpose.msra.mxu0 0.0
  %90 = vmatpush.xpose.msra.mxu0 0.0
  %91 = vmatpush.xpose.msra.mxu0 0.0
  %92 = vmatpush.xpose.msra.mxu0 0.0
  %93 = vmatpush.xpose.msra.mxu0 %v77
  %94 = vmatpush.xpose.msra.mxu0 %v75
  %95 = vmatmul.f32.gmra.mxu0 %v71
  %v96 = vpop.f32.mrf.mxu0
  %v97 = vadd.f32 0.0, %v96
  %98 = vmatmul.f32.gmra.mxu0 %v73
  %v99 = vpop.f32.mrf.mxu0
  %v100 = vadd.f32 0.0, %v99
  %101 = vdwg.mxu0
  %v102 = vmul.f32 %v97, 0.25
  %v103 = vmul.f32 %v100, 0.25
  %v104 = vadd.f32 %v102, %v61
  %v105 = vadd.f32 %v103, %v62
  %v106 = vsel %vm70, %v104, -inf
  %107 = vmax.xlane.f32.xlu0 %v106
  %v108 = vpop.xlane.xlu0 %107
  %v109 = vsel %vm70, %v105, -inf
  %110 = vmax.xlane.f32.xlu0 %v109
  %v111 = vpop.xlane.xlu0 %110
  %v112 = vsub.f32 %v104, %v108
  %v113 = vsub.f32 %v105, %v111
  %v114 = vmul.f32 %v112, 1.442695
  %v115 = vpow.pop %v114
  %v116 = vmul.f32 %v113, 1.442695
  %v117 = vpow.pop %v116
  %v118 = vsel %vm70, %v115, 0.0
  %119 = vadd.xlane.f32.xlu0 %v118
  %v120 = vpop.xlane.xlu0 %119
  %v121 = vsel %vm70, %v117, 0.0
  %122 = vadd.xlane.f32.xlu0 %v121
  %v123 = vpop.xlane.xlu0 %122
  %v124 = vrcp.pop %v120
  %v125 = vrcp.pop %v123
  %v126 = vmul.f32 %v115, %v124
  %v127 = vmul.f32 %v117, %v125
  %128 = vrot.lane.b32.xlu0 %v56, 64
  %v129 = vpop.permute.xlu0 %128
  %130 = vrot.lane.b32.xlu0 %v59, 64
  %v131 = vpop.permute.xlu0 %130
  %v135 = vsel %vm70, %v126, 0
  %v138 = vsel %vm70, %v127, 0
  %140 = vmatpush.msra.mxu0 0.0
  %141 = vmatpush.msra.mxu0 0.0
  %142 = vmatpush.msra.mxu0 0.0
  %143 = vmatpush.msra.mxu0 0.0
  %144 = vmatpush.msra.mxu0 0.0
  %145 = vmatpush.msra.mxu0 0.0
  %146 = vmatpush.msra.mxu0 0.0
  %147 = vmatpush.msra.mxu0 0.0
  %148 = vmatpush.msra.mxu0 0.0
  %149 = vmatpush.msra.mxu0 0.0
  %150 = vmatpush.msra.mxu0 0.0
  %151 = vmatpush.msra.mxu0 0.0
  %152 = vmatpush.msra.mxu0 0.0
  %153 = vmatpush.msra.mxu0 0.0
  %154 = vmatpush.msra.mxu0 %v131
  %155 = vmatpush.msra.mxu0 %v129
  %156 = vmatmul.f32.gmra.mxu0 %v135
  %v157 = vpop.f32.mrf.mxu0
  %v158 = vadd.f32 0.0, %v157
  %159 = vmatmul.f32.gmra.mxu0 %v138
  %v160 = vpop.f32.mrf.mxu0
  %v161 = vadd.f32 0.0, %v160
  %162 = vdwg.mxu0
  %v163 = vld [vmem:[%s2] sm:$0xff]
  %v164 = vld [vmem:[%s2 + $0x8] sm:$0xff]
  %v166 = vsel %vm70, %v158, 0
  %v169 = vsel %vm70, %v161, 0
  %171 = vmatpush.msra.mxu0 0.0
  %172 = vmatpush.msra.mxu0 0.0
  %173 = vmatpush.msra.mxu0 0.0
  %174 = vmatpush.msra.mxu0 0.0
  %175 = vmatpush.msra.mxu0 0.0
  %176 = vmatpush.msra.mxu0 0.0
  %177 = vmatpush.msra.mxu0 0.0
  %178 = vmatpush.msra.mxu0 0.0
  %179 = vmatpush.msra.mxu0 0.0
  %180 = vmatpush.msra.mxu0 0.0
  %181 = vmatpush.msra.mxu0 0.0
  %182 = vmatpush.msra.mxu0 0.0
  %183 = vmatpush.msra.mxu0 0.0
  %184 = vmatpush.msra.mxu0 0.0
  %185 = vmatpush.msra.mxu0 %v164
  %186 = vmatpush.msra.mxu0 %v163
  %187 = vmatmul.f32.gmra.mxu0 %v166
  %v188 = vpop.f32.mrf.mxu0
  %v189 = vadd.f32 0.0, %v188
  %190 = vmatmul.f32.gmra.mxu0 %v169
  %v191 = vpop.f32.mrf.mxu0
  %v192 = vadd.f32 0.0, %v191
  %193 = vdwg.mxu0
  %v195 = vperm.slane %v63, 0
  %v197 = vadd.f32 %v195, %v189
  %v198 = vadd.f32 %v195, %v192
  %199 = vrot.lane.b32.xlu0 %v56, 112
  %v200 = vpop.permute.xlu0 %199
  %201 = vrot.lane.b32.xlu0 %v59, 112
  %v202 = vpop.permute.xlu0 %201
  %203 = vrot.lane.b32.xlu0 %v56, 80
  %v204 = vpop.permute.xlu0 %203
  %205 = vrot.lane.b32.xlu0 %v59, 80
  %v206 = vpop.permute.xlu0 %205
  %v207 = vsel %vm70, %v200, 0
  %v209 = vsel %vm70, %v202, 0
  %v211 = vsel %vm70, %v204, 0
  %v213 = vsel %vm70, %v206, 0
  %215 = vmatpush.xpose.msra.mxu0 0.0
  %216 = vmatpush.xpose.msra.mxu0 0.0
  %217 = vmatpush.xpose.msra.mxu0 0.0
  %218 = vmatpush.xpose.msra.mxu0 0.0
  %219 = vmatpush.xpose.msra.mxu0 0.0
  %220 = vmatpush.xpose.msra.mxu0 0.0
  %221 = vmatpush.xpose.msra.mxu0 0.0
  %222 = vmatpush.xpose.msra.mxu0 0.0
  %223 = vmatpush.xpose.msra.mxu0 0.0
  %224 = vmatpush.xpose.msra.mxu0 0.0
  %225 = vmatpush.xpose.msra.mxu0 0.0
  %226 = vmatpush.xpose.msra.mxu0 0.0
  %227 = vmatpush.xpose.msra.mxu0 0.0
  %228 = vmatpush.xpose.msra.mxu0 0.0
  %229 = vmatpush.xpose.msra.mxu0 %v213
  %230 = vmatpush.xpose.msra.mxu0 %v211
  %231 = vmatmul.f32.gmra.mxu0 %v207
  %v232 = vpop.f32.mrf.mxu0
  %v233 = vadd.f32 0.0, %v232
  %234 = vmatmul.f32.gmra.mxu0 %v209
  %v235 = vpop.f32.mrf.mxu0
  %v236 = vadd.f32 0.0, %v235
  %237 = vdwg.mxu0
  %v238 = vmul.f32 %v233, 0.25
  %v239 = vmul.f32 %v236, 0.25
  %v240 = vadd.f32 %v238, %v61
  %v241 = vadd.f32 %v239, %v62
  %v242 = vsel %vm70, %v240, -inf
  %243 = vmax.xlane.f32.xlu0 %v242
  %v244 = vpop.xlane.xlu0 %243
  %v245 = vsel %vm70, %v241, -inf
  %246 = vmax.xlane.f32.xlu0 %v245
  %v247 = vpop.xlane.xlu0 %246
  %v248 = vsub.f32 %v240, %v244
  %v249 = vsub.f32 %v241, %v247
  %v250 = vmul.f32 %v248, 1.442695
  %v251 = vpow.pop %v250
  %v252 = vmul.f32 %v249, 1.442695
  %v253 = vpow.pop %v252
  %v254 = vsel %vm70, %v251, 0.0
  %255 = vadd.xlane.f32.xlu0 %v254
  %v256 = vpop.xlane.xlu0 %255
  %v257 = vsel %vm70, %v253, 0.0
  %258 = vadd.xlane.f32.xlu0 %v257
  %v259 = vpop.xlane.xlu0 %258
  %v260 = vrcp.pop %v256
  %v261 = vrcp.pop %v259
  %v262 = vmul.f32 %v251, %v260
  %v263 = vmul.f32 %v253, %v261
  %264 = vrot.lane.b32.xlu0 %v56, 48
  %v265 = vpop.permute.xlu0 %264
  %266 = vrot.lane.b32.xlu0 %v59, 48
  %v267 = vpop.permute.xlu0 %266
  %v271 = vsel %vm70, %v262, 0
  %v274 = vsel %vm70, %v263, 0
  %276 = vmatpush.msra.mxu0 0.0
  %277 = vmatpush.msra.mxu0 0.0
  %278 = vmatpush.msra.mxu0 0.0
  %279 = vmatpush.msra.mxu0 0.0
  %280 = vmatpush.msra.mxu0 0.0
  %281 = vmatpush.msra.mxu0 0.0
  %282 = vmatpush.msra.mxu0 0.0
  %283 = vmatpush.msra.mxu0 0.0
  %284 = vmatpush.msra.mxu0 0.0
  %285 = vmatpush.msra.mxu0 0.0
  %286 = vmatpush.msra.mxu0 0.0
  %287 = vmatpush.msra.mxu0 0.0
  %288 = vmatpush.msra.mxu0 0.0
  %289 = vmatpush.msra.mxu0 0.0
  %290 = vmatpush.msra.mxu0 %v267
  %291 = vmatpush.msra.mxu0 %v265
  %292 = vmatmul.f32.gmra.mxu0 %v271
  %v293 = vpop.f32.mrf.mxu0
  %v294 = vadd.f32 0.0, %v293
  %295 = vmatmul.f32.gmra.mxu0 %v274
  %v296 = vpop.f32.mrf.mxu0
  %v297 = vadd.f32 0.0, %v296
  %298 = vdwg.mxu0
  %s299 = scalar_lea.vmem %s2, 16
  %v300 = vld [vmem:[%s299] sm:$0xff]
  %v301 = vld [vmem:[%s299 + $0x8] sm:$0xff]
  %v303 = vsel %vm70, %v294, 0
  %v306 = vsel %vm70, %v297, 0
  %308 = vmatpush.msra.mxu0 0.0
  %309 = vmatpush.msra.mxu0 0.0
  %310 = vmatpush.msra.mxu0 0.0
  %311 = vmatpush.msra.mxu0 0.0
  %312 = vmatpush.msra.mxu0 0.0
  %313 = vmatpush.msra.mxu0 0.0
  %314 = vmatpush.msra.mxu0 0.0
  %315 = vmatpush.msra.mxu0 0.0
  %316 = vmatpush.msra.mxu0 0.0
  %317 = vmatpush.msra.mxu0 0.0
  %318 = vmatpush.msra.mxu0 0.0
  %319 = vmatpush.msra.mxu0 0.0
  %320 = vmatpush.msra.mxu0 0.0
  %321 = vmatpush.msra.mxu0 0.0
  %322 = vmatpush.msra.mxu0 %v301
  %323 = vmatpush.msra.mxu0 %v300
  %324 = vmatmul.f32.gmra.mxu0 %v303
  %v325 = vpop.f32.mrf.mxu0
  %v326 = vadd.f32 0.0, %v325
  %327 = vmatmul.f32.gmra.mxu0 %v306
  %v328 = vpop.f32.mrf.mxu0
  %v329 = vadd.f32 0.0, %v328
  %330 = vdwg.mxu0
  %v331 = vadd.f32 %v197, %v326
  %v332 = vadd.f32 %v198, %v329
  %333 = vst [vmem:[%s5] sm:$0xff] %v331
  %334 = vst [vmem:[%s5 + $0x8] sm:$0xff] %v332
  // Predicated region
  $region22: #{mhsa_forward.1} parent=0 // pred_check
    _
  $region23: #{mhsa_forward.1} parent=0 // pred_check_branch
    %336 = sbr.rel (0) target = $region25
  $region24: #{mhsa_forward.1} parent=0 // pred_region
    _
  $region25: #{mhsa_forward.1} parent=0 // pred_fallthru
    _
  // Predicated region
  $region26: #{mhsa_forward.1} parent=0 // pred_check
    _
  $region27: #{mhsa_forward.1} parent=0 // pred_check_branch
    %338 = sbr.rel (0) target = $region29
  $region28: #{mhsa_forward.1} parent=0 // pred_region
    _
  $region29: #{mhsa_forward.1} parent=0 // pred_fallthru
    _

</llo_original>
